<compile_context>
chip_gen: v7x
topology: tpu7x:2x2x1
jax: 0.10.0
libtpu: 0.0.40
codegen_flags: <defaults>
</compile_context>

<pallas_src>
import math

import jax
import jax.numpy as jnp
from jax.experimental import pallas as pl
from jax.experimental.pallas import tpu as pltpu


# --------------------------------------------------------------------------
# Kernel
# --------------------------------------------------------------------------
def _make_random_layer_kernel(n_inputs: int, scale: float):
    """Kernel ref order: x_0..x_{n-1}, R_0..R_{n-1}, out (one (tm, tn) tile)."""

    def kernel(*refs):
        xs = refs[:n_inputs]
        rs = refs[n_inputs:2 * n_inputs]
        out_ref = refs[2 * n_inputs]

        # First projection carries the 1/output_dim**(1/n) scaling (matches PyTorch).
        acc = jnp.dot(xs[0][...], rs[0][...],
                      preferred_element_type=jnp.float32) * scale
        for i in range(1, n_inputs):
            acc = acc * jnp.dot(xs[i][...], rs[i][...],
                                preferred_element_type=jnp.float32)
        out_ref[...] = acc.astype(out_ref.dtype)

    return kernel


# --------------------------------------------------------------------------
# Hardware-aware sizing helpers
# --------------------------------------------------------------------------
def _num_tensorcores() -> int:
    """1 for v2-v6 user-visible devices, 2 for v7x-class parts (heuristic)."""
    try:
        kind = jax.devices()[0].device_kind.lower()
    except Exception:
        return 1
    return 2 if "7" in kind else 1


def _vmem_budget_bytes(default: int = 16 << 20) -> int:
    """Conservative per-kernel VMEM budget derived from the chip generation."""
    try:
        info = pltpu.get_tpu_info()
        cap = int(info.vmem_capacity_bytes)  # 128 MiB v5e/v6e, 64 MiB v7x
        return max(default, cap // 4)
    except Exception:
        return default


def _choose_tile_m(batch: int, *, mxu_m: int = 256) -> int:
    """Batch tile: full batch when small, MXU-sized (256/128) when large."""
    if batch <= mxu_m:
        return batch
    for t in (mxu_m, 128):
        if batch % t == 0:
            return t
    # TODO(synk): mask partial batch tiles; for now keep a single M tile.
    return batch


def _choose_tile_n(output_dim, input_dims, tile_m, *, r_bytes, x_bytes,
                   out_bytes, vmem_budget_bytes, num_tensorcores):
    """Widest 128-aligned lane tile that fits the VMEM budget.

    Single-TC parts (v5e/v6e): prefer one full-width step (no per-step
    overhead with nothing to hide). Multi-TC parts (v7x): prefer exactly one
    tile per TensorCore so the "parallel" output axis shards across cores.
    """
    sum_d = sum(input_dims)

    def footprint(tile):
        r = 2 * sum_d * tile * r_bytes        # R column tiles (double-buffered)
        o = 2 * tile_m * tile * out_bytes     # output tile    (double-buffered)
        x = 2 * tile_m * sum_d * x_bytes      # x_i row tiles  (double-buffered)
        return r + o + x

    # Valid lane tiles: 128-aligned divisors of output_dim, plus output_dim itself.
    valid = [t for t in range(128, output_dim + 1, 128) if output_dim % t == 0]
    valid.append(output_dim)
    valid = sorted(set(valid), reverse=True)  # widest first

    preferred = output_dim
    if num_tensorcores > 1:
        per_core = pl.cdiv(output_dim, num_tensorcores)
        for t in valid:
            if t <= per_core:
                preferred = t
                break

    for t in valid:
        if t <= preferred and footprint(t) <= vmem_budget_bytes:
            return t
    # Nothing fits the soft budget: return the narrowest valid tile; the hard
    # vmem_limit_bytes passed to the compiler still governs.
    return valid[-1]


# --------------------------------------------------------------------------
# Forward wrapper
# --------------------------------------------------------------------------
def random_layer_forward(input_list, random_matrices, *, tile_m=None, tile_n=None,
                         compute_dtype=jnp.bfloat16, vmem_budget_bytes=None):
    """Pallas implementation of RandomLayer.forward.

    input_list:       list of (B, d_i) arrays
    random_matrices:  list of (d_i, output_dim) arrays (ideally pre-cast to
                      compute_dtype so this call does no weight casting)
    """
    n = len(input_list)
    assert n == len(random_matrices) and n >= 1
    B = input_list[0].shape[0]
    output_dim = random_matrices[0].shape[1]
    input_dims = [r.shape[0] for r in random_matrices]

    # Cast only when needed; pre-casting R at layer init makes this a no-op for R.
    xs = [x if x.dtype == compute_dtype else x.astype(compute_dtype)
          for x in input_list]
    rs = [r if r.dtype == compute_dtype else r.astype(compute_dtype)
          for r in random_matrices]

    if vmem_budget_bytes is None:
        vmem_budget_bytes = _vmem_budget_bytes()
    num_tc = _num_tensorcores()
    if tile_m is None:
        tile_m = _choose_tile_m(B)
    cbytes = jnp.dtype(compute_dtype).itemsize
    if tile_n is None:
        tile_n = _choose_tile_n(output_dim, input_dims, tile_m,
                                r_bytes=cbytes, x_bytes=cbytes, out_bytes=4,
                                vmem_budget_bytes=vmem_budget_bytes,
                                num_tensorcores=num_tc)
    assert output_dim % tile_n == 0, "output_dim must be a multiple of tile_n"
    assert tile_n == output_dim or tile_n % 128 == 0, "lane tile must be 128-aligned"
    assert B % tile_m == 0, "batch must be a multiple of tile_m"

    scale = 1.0 / math.pow(float(output_dim), 1.0 / n)
    kernel = _make_random_layer_kernel(n, scale)

    # x_i: (tile_m, d_i) row tiles marching along batch.
    x_specs = [pl.BlockSpec((tile_m, d), lambda i, j: (i, 0)) for d in input_dims]
    # R_i: lane-dense (d_i, tile_n) column tiles marching along output_dim.
    r_specs = [pl.BlockSpec((d, tile_n), lambda i, j: (0, j)) for d in input_dims]
    # Output: lane-dense (tile_m, tile_n) slab -> wide unmasked stores.
    out_spec = pl.BlockSpec((tile_m, tile_n), lambda i, j: (i, j))

    grid = (B // tile_m, output_dim // tile_n)

    sum_d = sum(input_dims)
    flops = 2 * B * sum_d * output_dim + n * B * output_dim
    bytes_accessed = (cbytes * (B * sum_d + sum_d * output_dim)
                      + 4 * B * output_dim)
    cost = pl.CostEstimate(flops=flops, transcendentals=0,
                           bytes_accessed=bytes_accessed)

    return pl.pallas_call(
        kernel,
        out_shape=jax.ShapeDtypeStruct((B, output_dim), jnp.float32),
        grid=grid,
        in_specs=x_specs + r_specs,
        out_specs=out_spec,
        compiler_params=pltpu.CompilerParams(
            dimension_semantics=("parallel", "parallel"),
            vmem_limit_bytes=int(vmem_budget_bytes),
        ),
        cost_estimate=cost,
    )(*xs, *rs)


class RandomLayerPallas:
    """JAX/Pallas counterpart of the PyTorch RandomLayer.

    The fixed random projections are generated once at init and pre-cast to the
    compute dtype, so the per-forward path never re-casts R (hoists the bf16
    cast out of the hot path). Pass compute_dtype=jnp.float32 for bit-level
    parity with the PyTorch f32 forward.
    """

    def __init__(self, input_dim_list, output_dim=1024, *, key=None,
                 compute_dtype=jnp.bfloat16):
        self.input_num = len(input_dim_list)
        self.output_dim = output_dim
        self.compute_dtype = compute_dtype
        if key is None:
            key = jax.random.PRNGKey(0)
        keys = jax.random.split(key, self.input_num)
        # f32 master copies (PyTorch-equivalent randn); cast ONCE for the kernel.
        self.random_matrix_f32 = [
            jax.random.normal(keys[i], (input_dim_list[i], output_dim),
                              dtype=jnp.float32)
            for i in range(self.input_num)
        ]
        self.random_matrix = [r.astype(compute_dtype)
                              for r in self.random_matrix_f32]

    def __call__(self, input_list):
        return random_layer_forward(input_list, self.random_matrix,
                                    compute_dtype=self.compute_dtype)


def random_layer_reference(input_list, random_matrices):
    """Pure-JAX reference mirroring the PyTorch forward."""
    n = len(input_list)
    projs = [jnp.dot(x, r, preferred_element_type=jnp.float32)
             for x, r in zip(input_list, random_matrices)]
    out = projs[0] / math.pow(float(random_matrices[0].shape[1]), 1.0 / n)
    for p in projs[1:]:
        out = out * p
    return out


if __name__ == "__main__":
    # Deterministic small problem consistent with RandomLayer:
    #   input_dim_list = [32, 16], output_dim = 1024, batch = 8
    key = jax.random.PRNGKey(0)
    k_layer, k0, k1 = jax.random.split(key, 3)

    batch = 8
    input_dim_list = [32, 16]
    output_dim = 1024

    layer = RandomLayerPallas(input_dim_list, output_dim, key=k_layer)

    x0 = jax.random.normal(k0, (batch, input_dim_list[0]), dtype=jnp.float32)
    x1 = jax.random.normal(k1, (batch, input_dim_list[1]), dtype=jnp.float32)
    inputs = [x0, x1]

    out = jax.block_until_ready(layer(inputs))
    assert out.shape == (batch, output_dim)
    assert out.dtype == jnp.float32

    # Tight check: reference built from the SAME bf16-rounded operands
    # (isolates kernel correctness from the deliberate bf16 precision policy).
    inputs_bf = [x.astype(jnp.bfloat16).astype(jnp.float32) for x in inputs]
    mats_bf = [r.astype(jnp.float32) for r in layer.random_matrix]
    ref_matched = random_layer_reference(inputs_bf, mats_bf)
    assert jnp.allclose(out, ref_matched, atol=1e-3, rtol=1e-3), \
        "mismatch vs matched-precision reference"

    # Loose sanity check vs. the pure-f32 (PyTorch-equivalent) forward:
    # norm-relative error well below 5% given bf16 weights/inputs.
    ref_f32 = random_layer_reference(inputs, layer.random_matrix_f32)
    rel = jnp.linalg.norm(out - ref_f32) / jnp.linalg.norm(ref_f32)
    assert float(rel) < 5e-2, f"relative error vs f32 reference too large: {rel}"

    print("KERNEL_OK")
</pallas_src>

<mosaic_0001>
module attributes {stable_mosaic.version = 11 : i64} {
  func.func @kernel(%arg0: i32, %arg1: i32, %arg2: memref<8x32xbf16, #tpu.memory_space<vmem>>, %arg3: memref<8x16xbf16, #tpu.memory_space<vmem>>, %arg4: memref<32x1024xbf16, #tpu.memory_space<vmem>>, %arg5: memref<16x1024xbf16, #tpu.memory_space<vmem>>, %arg6: memref<8x1024xf32, #tpu.memory_space<vmem>>) attributes {dimension_semantics = [#tpu.dimension_semantics<parallel>, #tpu.dimension_semantics<parallel>], iteration_bounds = array<i64: 1, 1>, scalar_prefetch = 0 : i64, scratch_operands = 0 : i64, tpu.core_type = #tpu.core_type<tc>, window_params = [{transform_indices = @transform_0, window_bounds = array<i64: 8, 32>}, {transform_indices = @transform_1, window_bounds = array<i64: 8, 16>}, {transform_indices = @transform_2, window_bounds = array<i64: 32, 1024>}, {transform_indices = @transform_3, window_bounds = array<i64: 16, 1024>}, {transform_indices = @transform_4, window_bounds = array<i64: 8, 1024>}]} {
    %c0 = arith.constant 0 : index
    %c0_0 = arith.constant 0 : index
    %0 = vector.load %arg2[%c0, %c0_0] : memref<8x32xbf16, #tpu.memory_space<vmem>>, vector<8x32xbf16>
    %c0_1 = arith.constant 0 : index
    %c0_2 = arith.constant 0 : index
    %1 = vector.load %arg4[%c0_1, %c0_2] : memref<32x1024xbf16, #tpu.memory_space<vmem>>, vector<32x1024xbf16>
    %cst = arith.constant dense<0.000000e+00> : vector<8x1024xf32>
    %2 = tpu.matmul %0, %1, %cst {dimension_numbers = #tpu.dot_dimension_numbers<[1], [0], [0], [1], [0, 0, 1, 1], [], []>} : vector<8x32xbf16>, vector<32x1024xbf16>, vector<8x1024xf32> -> vector<8x1024xf32>
    %cst_3 = arith.constant 3.125000e-02 : f32
    %3 = vector.broadcast %cst_3 : f32 to vector<8x1024xf32>
    %4 = arith.mulf %2, %3 : vector<8x1024xf32>
    %c0_4 = arith.constant 0 : index
    %c0_5 = arith.constant 0 : index
    %5 = vector.load %arg3[%c0_4, %c0_5] : memref<8x16xbf16, #tpu.memory_space<vmem>>, vector<8x16xbf16>
    %c0_6 = arith.constant 0 : index
    %c0_7 = arith.constant 0 : index
    %6 = vector.load %arg5[%c0_6, %c0_7] : memref<16x1024xbf16, #tpu.memory_space<vmem>>, vector<16x1024xbf16>
    %cst_8 = arith.constant dense<0.000000e+00> : vector<8x1024xf32>
    %7 = tpu.matmul %5, %6, %cst_8 {dimension_numbers = #tpu.dot_dimension_numbers<[1], [0], [0], [1], [0, 0, 1, 1], [], []>} : vector<8x16xbf16>, vector<16x1024xbf16>, vector<8x1024xf32> -> vector<8x1024xf32>
    %8 = arith.mulf %4, %7 : vector<8x1024xf32>
    %c0_9 = arith.constant 0 : index
    %c0_10 = arith.constant 0 : index
    %9 = vector.load %arg6[%c0_9, %c0_10] : memref<8x1024xf32, #tpu.memory_space<vmem>>, vector<8x1024xf32>
    tpu.vector_store %arg6[%c0_9, %c0_10], %8 {strides = array<i32>} : memref<8x1024xf32, #tpu.memory_space<vmem>>, vector<8x1024xf32>,
    return
  }
  func.func @transform_0(%arg0: i32, %arg1: i32) -> (i32, i32) {
    %c0_i32 = arith.constant 0 : i32
    %c0_i32_0 = arith.constant 0 : i32
    return %arg0, %c0_i32 : i32, i32
  }
  func.func @transform_1(%arg0: i32, %arg1: i32) -> (i32, i32) {
    %c0_i32 = arith.constant 0 : i32
    %c0_i32_0 = arith.constant 0 : i32
    return %arg0, %c0_i32 : i32, i32
  }
  func.func @transform_2(%arg0: i32, %arg1: i32) -> (i32, i32) {
    %c0_i32 = arith.constant 0 : i32
    %c0_i32_0 = arith.constant 0 : i32
    return %c0_i32, %arg1 : i32, i32
  }
  func.func @transform_3(%arg0: i32, %arg1: i32) -> (i32, i32) {
    %c0_i32 = arith.constant 0 : i32
    %c0_i32_0 = arith.constant 0 : i32
    return %c0_i32, %arg1 : i32, i32
  }
  func.func @transform_4(%arg0: i32, %arg1: i32) -> (i32, i32) {
    %c0_i32 = arith.constant 0 : i32
    return %arg0, %arg1 : i32, i32
  }
}

</mosaic_0001>

<llo_original>
// kernel: tpu_custom_call.1
$region0: #{tpu_custom_call.1}
  #allocation0 [shape = 'u32[]', space=smem, size = 0x4, offset = 0x4, fixed_abs, tag = 'smem constant byte address 0x4 - core index']
  #allocation1 [shape = 'u32[144,128]{1,0:T(1,128)}', space=vmem, size = 0x12000, scoped, tag = 'internal scratch']
  %s0 = inlined_call_operand.hbm [shape: bf16[8,32], index: 0, kind: input, shape index: {}]
  %s1 = inlined_call_operand.hbm [shape: bf16[8,16], index: 1, kind: input, shape index: {}]
  %s2 = inlined_call_operand.hbm [shape: bf16[32,1024], index: 2, kind: input, shape index: {}]
  %s3 = inlined_call_operand.hbm [shape: bf16[16,1024], index: 3, kind: input, shape index: {}]
  %s4 = inlined_call_operand.hbm [shape: f32[8,1024], index: 4, kind: output, shape index: {}]
  %s5 = sld [smem:[#allocation0]]
  $region42: #{tpu_custom_call.1} parent=0
    _
  %s7 = ssub.s32 1, %s5
  %s8 = scalar_select 0, %s7, %s5
  $region1: #{tpu_custom_call.1} parent=0
    #allocation2 [shape = 'u8[2048]{0}', space=vmem, size = 0x800, scoped, tag = 'input window, operand 0, single buffered']
    #allocation3 [shape = 's32[1]{0}', space=sflag, size = 0x4, scoped, tag = 'scoped memory for tpu_custom_call.1']
    #allocation4 [shape = 's32[1]{0}', space=sflag, size = 0x4, scoped, tag = 'scoped memory for tpu_custom_call.1']
    #allocation5 [shape = 'u8[2048]{0}', space=vmem, size = 0x800, scoped, tag = 'input window, operand 1, single buffered']
    #allocation6 [shape = 's32[1]{0}', space=sflag, size = 0x4, scoped, tag = 'scoped memory for tpu_custom_call.1']
    #allocation7 [shape = 'u8[65536]{0}', space=vmem, size = 0x10000, scoped, tag = 'input window, operand 2, single buffered']
    #allocation8 [shape = 'u8[32768]{0}', space=vmem, size = 0x8000, scoped, tag = 'input window, operand 3, single buffered']
    #allocation9 [shape = 's32[1]{0}', space=sflag, size = 0x4, scoped, tag = 'scoped memory for tpu_custom_call.1']
    #allocation10 [shape = 'u8[32768]{0}', space=vmem, size = 0x8000, scoped, tag = 'output window, operand 0, single buffered']
    %9 = vsyncpa [#allocation3], 0
    %10 = vsyncpa [#allocation6], 0
    %11 = vsyncpa [#allocation9], 0
    %12 = vsyncpa [#allocation4], 0
    // Predicated region
    $region2: #{tpu_custom_call.1} parent=1 // pred_check
      _
    $region3: #{tpu_custom_call.1} parent=1 // pred_check_branch
      %14 = sbr.rel (0) target = $region5
    $region4: #{tpu_custom_call.1} parent=1 // pred_region
      %s16 = ssub.s32 64, 64
      %17 = vsyncadd [#allocation3], %s16
      %s19 = sshll.u32 [#allocation2], 4
      %s20 = int_to_ptr.vmem [resolvable:$true] %s19
      %22 = dma.hbm_to_vmem [thread:$0]  %s0, 64, %s20, [#allocation3]
    $region5: #{tpu_custom_call.1} parent=1 // pred_fallthru
      _
    // Predicated region
    $region6: #{tpu_custom_call.1} parent=1 // pred_check
      _
    $region7: #{tpu_custom_call.1} parent=1 // pred_check_branch
      %24 = sbr.rel (0) target = $region9
    $region8: #{tpu_custom_call.1} parent=1 // pred_region
      %s26 = ssub.s32 64, 64
      %27 = vsyncadd [#allocation6], %s26
      %s29 = sshll.u32 [#allocation5], 4
      %s30 = int_to_ptr.vmem [resolvable:$true] %s29
      %32 = dma.hbm_to_vmem [thread:$0]  %s1, 64, %s30, [#allocation6]
    $region9: #{tpu_custom_call.1} parent=1 // pred_fallthru
      _
    // Predicated region
    $region10: #{tpu_custom_call.1} parent=1 // pred_check
      _
    $region11: #{tpu_custom_call.1} parent=1 // pred_check_branch
      %34 = sbr.rel (0) target = $region13
    $region12: #{tpu_custom_call.1} parent=1 // pred_region
      %s36 = ssub.s32 2048, 2048
      %37 = vsyncadd [#allocation6], %s36
      %s38 = sshll.u32 [#allocation7], 4
      %s39 = int_to_ptr.vmem [resolvable:$true] %s38
      %44 = dma.hbm_to_vmem [thread:$0]  %s2, 2048, %s39, [#allocation6], 512, 512, 32
    $region13: #{tpu_custom_call.1} parent=1 // pred_fallthru
      _
    // Predicated region
    $region14: #{tpu_custom_call.1} parent=1 // pred_check
      _
    $region15: #{tpu_custom_call.1} parent=1 // pred_check_branch
      %46 = sbr.rel (0) target = $region17
    $region16: #{tpu_custom_call.1} parent=1 // pred_region
      %s48 = ssub.s32 1024, 1024
      %49 = vsyncadd [#allocation9], %s48
      %s50 = sshll.u32 [#allocation8], 4
      %s51 = int_to_ptr.vmem [resolvable:$true] %s50
      %56 = dma.hbm_to_vmem [thread:$0]  %s3, 1024, %s51, [#allocation9], 512, 512, 32
    $region17: #{tpu_custom_call.1} parent=1 // pred_fallthru
      _
    // Predicated region
    $region18: #{tpu_custom_call.1} parent=1 // pred_check
      _
    $region19: #{tpu_custom_call.1} parent=1 // pred_check_branch
      %58 = sbr.rel (0) target = $region21
    $region20: #{tpu_custom_call.1} parent=1 // pred_region
      %59 = dma.done [#allocation3], 64
    $region21: #{tpu_custom_call.1} parent=1 // pred_fallthru
      _
    // Predicated region
    $region22: #{tpu_custom_call.1} parent=1 // pred_check
      _
    $region23: #{tpu_custom_call.1} parent=1 // pred_check_branch
      %61 = sbr.rel (0) target = $region25
    $region24: #{tpu_custom_call.1} parent=1 // pred_region
      %62 = dma.done [#allocation6], 64
    $region25: #{tpu_custom_call.1} parent=1 // pred_fallthru
      _
    // Predicated region
    $region26: #{tpu_custom_call.1} parent=1 // pred_check
      _
    $region27: #{tpu_custom_call.1} parent=1 // pred_check_branch
      %64 = sbr.rel (0) target = $region29
    $region28: #{tpu_custom_call.1} parent=1 // pred_region
      %65 = dma.done [#allocation6], 2048
    $region29: #{tpu_custom_call.1} parent=1 // pred_fallthru
      _
    // Predicated region
    $region30: #{tpu_custom_call.1} parent=1 // pred_check
      _
    $region31: #{tpu_custom_call.1} parent=1 // pred_check_branch
      %67 = sbr.rel (0) target = $region33
    $region32: #{tpu_custom_call.1} parent=1 // pred_region
      %68 = dma.done [#allocation9], 1024
    $region33: #{tpu_custom_call.1} parent=1 // pred_fallthru
      _
    %v70 = vld [vmem:[#allocation2] sm:$0xf]
    %v71 = vld [vmem:[#allocation7] sm:$0xff]
    %v72 = vld [vmem:[#allocation7 + $0x8] sm:$0xff]
    %v73 = vld [vmem:[#allocation7 + $0x10] sm:$0xff]
    %v74 = vld [vmem:[#allocation7 + $0x18] sm:$0xff]
    %v75 = vld [vmem:[#allocation7 + $0x20] sm:$0xff]
    %v76 = vld [vmem:[#allocation7 + $0x28] sm:$0xff]
    %v77 = vld [vmem:[#allocation7 + $0x30] sm:$0xff]
    %v78 = vld [vmem:[#allocation7 + $0x38] sm:$0xff]
    %v79 = vld [vmem:[#allocation7 + $0x40] sm:$0xff]
    %v80 = vld [vmem:[#allocation7 + $0x48] sm:$0xff]
    %v81 = vld [vmem:[#allocation7 + $0x50] sm:$0xff]
    %v82 = vld [vmem:[#allocation7 + $0x58] sm:$0xff]
    %v83 = vld [vmem:[#allocation7 + $0x60] sm:$0xff]
    %v84 = vld [vmem:[#allocation7 + $0x68] sm:$0xff]
    %v85 = vld [vmem:[#allocation7 + $0x70] sm:$0xff]
    %v86 = vld [vmem:[#allocation7 + $0x78] sm:$0xff]
    %v103 = vunpack.c.l.b16 %v71
    %v104 = vunpack.c.h.b16 %v71
    %v105 = vunpack.c.l.b16 %v72
    %v106 = vunpack.c.h.b16 %v72
    %v107 = vunpack.c.l.b16 %v73
    %v108 = vunpack.c.h.b16 %v73
    %v109 = vunpack.c.l.b16 %v74
    %v110 = vunpack.c.h.b16 %v74
    %v111 = vunpack.c.l.b16 %v75
    %v112 = vunpack.c.h.b16 %v75
    %v113 = vunpack.c.l.b16 %v76
    %v114 = vunpack.c.h.b16 %v76
    %v115 = vunpack.c.l.b16 %v77
    %v116 = vunpack.c.h.b16 %v77
    %v117 = vunpack.c.l.b16 %v78
    %v118 = vunpack.c.h.b16 %v78
    %v119 = vunpack.c.l.b16 %v79
    %v120 = vunpack.c.h.b16 %v79
    %v121 = vunpack.c.l.b16 %v80
    %v122 = vunpack.c.h.b16 %v80
    %v123 = vunpack.c.l.b16 %v81
    %v124 = vunpack.c.h.b16 %v81
    %v125 = vunpack.c.l.b16 %v82
    %v126 = vunpack.c.h.b16 %v82
    %v127 = vunpack.c.l.b16 %v83
    %v128 = vunpack.c.h.b16 %v83
    %v129 = vunpack.c.l.b16 %v84
    %v130 = vunpack.c.h.b16 %v84
    %v131 = vunpack.c.l.b16 %v85
    %v132 = vunpack.c.h.b16 %v85
    %v133 = vunpack.c.l.b16 %v86
    %v134 = vunpack.c.h.b16 %v86
    %v135 = vpack.c.b16 %v111, %v103
    %v136 = vpack.c.b16 %v112, %v104
    %v137 = vpack.c.b16 %v113, %v105
    %v138 = vpack.c.b16 %v114, %v106
    %v139 = vpack.c.b16 %v115, %v107
    %v140 = vpack.c.b16 %v116, %v108
    %v141 = vpack.c.b16 %v117, %v109
    %v142 = vpack.c.b16 %v118, %v110
    %v143 = vpack.c.b16 %v127, %v119
    %v144 = vpack.c.b16 %v128, %v120
    %v145 = vpack.c.b16 %v129, %v121
    %v146 = vpack.c.b16 %v130, %v122
    %v147 = vpack.c.b16 %v131, %v123
    %v148 = vpack.c.b16 %v132, %v124
    %v149 = vpack.c.b16 %v133, %v125
    %v150 = vpack.c.b16 %v134, %v126
    %vm167 = vcmask 261120
    %v169 = vsel %vm167, %v70, 0
    %171 = vmatprep.subr.bf16.mxu0 %v136
    %172 = vmatpush1.bf16.msra.mxu0 %v135
    %173 = vmatprep.subr.bf16.mxu0 %v144
    %174 = vmatpush1.bf16.msra.mxu0 %v143
    %175 = vmatprep.subr.bf16.mxu0 0
    %176 = vmatpush1.bf16.msra.mxu0 0
    %177 = vmatprep.subr.bf16.mxu0 0
    %178 = vmatpush1.bf16.msra.mxu0 0
    %179 = vmatprep.subr.bf16.mxu0 0
    %180 = vmatpush1.bf16.msra.mxu0 0
    %181 = vmatprep.subr.bf16.mxu0 0
    %182 = vmatpush1.bf16.msra.mxu0 0
    %183 = vmatprep.subr.bf16.mxu0 0
    %184 = vmatpush1.bf16.msra.mxu0 0
    %185 = vmatprep.subr.bf16.mxu0 0
    %186 = vmatpush1.bf16.msra.mxu0 0
    %187 = vmatprep.subr.bf16.mxu0 0
    %188 = vmatpush1.bf16.msra.mxu0 0
    %189 = vmatprep.subr.bf16.mxu0 0
    %190 = vmatpush1.bf16.msra.mxu0 0
    %191 = vmatprep.subr.bf16.mxu0 0
    %192 = vmatpush1.bf16.msra.mxu0 0
    %193 = vmatprep.subr.bf16.mxu0 0
    %194 = vmatpush1.bf16.msra.mxu0 0
    %195 = vmatprep.subr.bf16.mxu0 0
    %196 = vmatpush1.bf16.msra.mxu0 0
    %197 = vmatprep.subr.bf16.mxu0 0
    %198 = vmatpush1.bf16.msra.mxu0 0
    %199 = vmatprep.subr.bf16.mxu0 0
    %200 = vmatpush1.bf16.msra.mxu0 0
    %201 = vmatprep.subr.bf16.mxu0 0
    %202 = vmatpush1.bf16.msra.mxu0 0
    %203 = vmatprep.mubr.bf16.mxu0 0
    %204 = vmatmul.mubr.bf16.gmra.mrb[0].mxu0 %v169
    %v205 = vpop.f32.mrb[0].mxu0
    %v206 = vadd.f32 0.0, %v205
    %v207 = vpop.f32.mrb[0].mxu0
    %v208 = vadd.f32 0.0, %v207
    %v209 = vpop.f32.mrb[0].mxu0
    %v210 = vpop.f32.mrb[0].mxu0
    %211 = vdwg.mxu0
    %212 = vmatprep.subr.bf16.mxu0 %v138
    %213 = vmatpush1.bf16.msra.mxu0 %v137
    %214 = vmatprep.subr.bf16.mxu0 %v146
    %215 = vmatpush1.bf16.msra.mxu0 %v145
    %216 = vmatprep.subr.bf16.mxu0 0
    %217 = vmatpush1.bf16.msra.mxu0 0
    %218 = vmatprep.subr.bf16.mxu0 0
    %219 = vmatpush1.bf16.msra.mxu0 0
    %220 = vmatprep.subr.bf16.mxu0 0
    %221 = vmatpush1.bf16.msra.mxu0 0
    %222 = vmatprep.subr.bf16.mxu0 0
    %223 = vmatpush1.bf16.msra.mxu0 0
    %224 = vmatprep.subr.bf16.mxu0 0
    %225 = vmatpush1.bf16.msra.mxu0 0
    %226 = vmatprep.subr.bf16.mxu0 0
    %227 = vmatpush1.bf16.msra.mxu0 0
    %228 = vmatprep.subr.bf16.mxu0 0
    %229 = vmatpush1.bf16.msra.mxu0 0
    %230 = vmatprep.subr.bf16.mxu0 0
    %231 = vmatpush1.bf16.msra.mxu0 0
    %232 = vmatprep.subr.bf16.mxu0 0
    %233 = vmatpush1.bf16.msra.mxu0 0
    %234 = vmatprep.subr.bf16.mxu0 0
    %235 = vmatpush1.bf16.msra.mxu0 0
    %236 = vmatprep.subr.bf16.mxu0 0
    %237 = vmatpush1.bf16.msra.mxu0 0
    %238 = vmatprep.subr.bf16.mxu0 0
    %239 = vmatpush1.bf16.msra.mxu0 0
    %240 = vmatprep.subr.bf16.mxu0 0
    %241 = vmatpush1.bf16.msra.mxu0 0
    %242 = vmatprep.subr.bf16.mxu0 0
    %243 = vmatpush1.bf16.msra.mxu0 0
    %244 = vmatprep.mubr.bf16.mxu0 0
    %245 = vmatmul.mubr.bf16.gmra.mrb[0].mxu0 %v169
    %v246 = vpop.f32.mrb[0].mxu0
    %v247 = vadd.f32 0.0, %v246
    %v248 = vpop.f32.mrb[0].mxu0
    %v249 = vadd.f32 0.0, %v248
    %v250 = vpop.f32.mrb[0].mxu0
    %v251 = vpop.f32.mrb[0].mxu0
    %252 = vdwg.mxu0
    %253 = vmatprep.subr.bf16.mxu0 %v140
    %254 = vmatpush1.bf16.msra.mxu0 %v139
    %255 = vmatprep.subr.bf16.mxu0 %v148
    %256 = vmatpush1.bf16.msra.mxu0 %v147
    %257 = vmatprep.subr.bf16.mxu0 0
    %258 = vmatpush1.bf16.msra.mxu0 0
    %259 = vmatprep.subr.bf16.mxu0 0
    %260 = vmatpush1.bf16.msra.mxu0 0
    %261 = vmatprep.subr.bf16.mxu0 0
    %262 = vmatpush1.bf16.msra.mxu0 0
    %263 = vmatprep.subr.bf16.mxu0 0
    %264 = vmatpush1.bf16.msra.mxu0 0
    %265 = vmatprep.subr.bf16.mxu0 0
    %266 = vmatpush1.bf16.msra.mxu0 0
    %267 = vmatprep.subr.bf16.mxu0 0
    %268 = vmatpush1.bf16.msra.mxu0 0
    %269 = vmatprep.subr.bf16.mxu0 0
    %270 = vmatpush1.bf16.msra.mxu0 0
    %271 = vmatprep.subr.bf16.mxu0 0
    %272 = vmatpush1.bf16.msra.mxu0 0
    %273 = vmatprep.subr.bf16.mxu0 0
    %274 = vmatpush1.bf16.msra.mxu0 0
    %275 = vmatprep.subr.bf16.mxu0 0
    %276 = vmatpush1.bf16.msra.mxu0 0
    %277 = vmatprep.subr.bf16.mxu0 0
    %278 = vmatpush1.bf16.msra.mxu0 0
    %279 = vmatprep.subr.bf16.mxu0 0
    %280 = vmatpush1.bf16.msra.mxu0 0
    %281 = vmatprep.subr.bf16.mxu0 0
    %282 = vmatpush1.bf16.msra.mxu0 0
    %283 = vmatprep.subr.bf16.mxu0 0
    %284 = vmatpush1.bf16.msra.mxu0 0
    %285 = vmatprep.mubr.bf16.mxu0 0
    %286 = vmatmul.mubr.bf16.gmra.mrb[0].mxu0 %v169
    %v287 = vpop.f32.mrb[0].mxu0
    %v288 = vadd.f32 0.0, %v287
    %v289 = vpop.f32.mrb[0].mxu0
    %v290 = vadd.f32 0.0, %v289
    %v291 = vpop.f32.mrb[0].mxu0
    %v292 = vpop.f32.mrb[0].mxu0
    %293 = vdwg.mxu0
    %294 = vmatprep.subr.bf16.mxu0 %v142
    %295 = vmatpush1.bf16.msra.mxu0 %v141
    %296 = vmatprep.subr.bf16.mxu0 %v150
    %297 = vmatpush1.bf16.msra.mxu0 %v149
    %298 = vmatprep.subr.bf16.mxu0 0
    %299 = vmatpush1.bf16.msra.mxu0 0
    %300 = vmatprep.subr.bf16.mxu0 0
    %301 = vmatpush1.bf16.msra.mxu0 0
    %302 = vmatprep.subr.bf16.mxu0 0
    %303 = vmatpush1.bf16.msra.mxu0 0
    %304 = vmatprep.subr.bf16.mxu0 0
    %305 = vmatpush1.bf16.msra.mxu0 0
    %306 = vmatprep.subr.bf16.mxu0 0
    %307 = vmatpush1.bf16.msra.mxu0 0
    %308 = vmatprep.subr.bf16.mxu0 0
    %309 = vmatpush1.bf16.msra.mxu0 0
    %310 = vmatprep.subr.bf16.mxu0 0
    %311 = vmatpush1.bf16.msra.mxu0 0
    %312 = vmatprep.subr.bf16.mxu0 0
    %313 = vmatpush1.bf16.msra.mxu0 0
    %314 = vmatprep.subr.bf16.mxu0 0
    %315 = vmatpush1.bf16.msra.mxu0 0
    %316 = vmatprep.subr.bf16.mxu0 0
    %317 = vmatpush1.bf16.msra.mxu0 0
    %318 = vmatprep.subr.bf16.mxu0 0
    %319 = vmatpush1.bf16.msra.mxu0 0
    %320 = vmatprep.subr.bf16.mxu0 0
    %321 = vmatpush1.bf16.msra.mxu0 0
    %322 = vmatprep.subr.bf16.mxu0 0
    %323 = vmatpush1.bf16.msra.mxu0 0
    %324 = vmatprep.subr.bf16.mxu0 0
    %325 = vmatpush1.bf16.msra.mxu0 0
    %326 = vmatprep.mubr.bf16.mxu0 0
    %327 = vmatmul.mubr.bf16.gmra.mrb[0].mxu0 %v169
    %v328 = vpop.f32.mrb[0].mxu0
    %v329 = vadd.f32 0.0, %v328
    %v330 = vpop.f32.mrb[0].mxu0
    %v331 = vadd.f32 0.0, %v330
    %v332 = vpop.f32.mrb[0].mxu0
    %v333 = vpop.f32.mrb[0].mxu0
    %334 = vdwg.mxu0
    %v335 = vmul.f32 %v206, 0.03125
    %v336 = vmul.f32 %v208, 0.03125
    %v337 = vmul.f32 %v247, 0.03125
    %v338 = vmul.f32 %v249, 0.03125
    %v339 = vmul.f32 %v288, 0.03125
    %v340 = vmul.f32 %v290, 0.03125
    %v341 = vmul.f32 %v329, 0.03125
    %v342 = vmul.f32 %v331, 0.03125
    %v343 = vld [vmem:[#allocation5] sm:$0xf]
    %v344 = vld [vmem:[#allocation8] sm:$0xff]
    %v345 = vld [vmem:[#allocation8 + $0x8] sm:$0xff]
    %v346 = vld [vmem:[#allocation8 + $0x10] sm:$0xff]
    %v347 = vld [vmem:[#allocation8 + $0x18] sm:$0xff]
    %v348 = vld [vmem:[#allocation8 + $0x20] sm:$0xff]
    %v349 = vld [vmem:[#allocation8 + $0x28] sm:$0xff]
    %v350 = vld [vmem:[#allocation8 + $0x30] sm:$0xff]
    %v351 = vld [vmem:[#allocation8 + $0x38] sm:$0xff]
    %v360 = vunpack.c.l.b16 %v344
    %v361 = vunpack.c.h.b16 %v344
    %v362 = vunpack.c.l.b16 %v345
    %v363 = vunpack.c.h.b16 %v345
    %v364 = vunpack.c.l.b16 %v346
    %v365 = vunpack.c.h.b16 %v346
    %v366 = vunpack.c.l.b16 %v347
    %v367 = vunpack.c.h.b16 %v347
    %v368 = vunpack.c.l.b16 %v348
    %v369 = vunpack.c.h.b16 %v348
    %v370 = vunpack.c.l.b16 %v349
    %v371 = vunpack.c.h.b16 %v349
    %v372 = vunpack.c.l.b16 %v350
    %v373 = vunpack.c.h.b16 %v350
    %v374 = vunpack.c.l.b16 %v351
    %v375 = vunpack.c.h.b16 %v351
    %v376 = vpack.c.b16 %v368, %v360
    %v377 = vpack.c.b16 %v369, %v361
    %v378 = vpack.c.b16 %v370, %v362
    %v379 = vpack.c.b16 %v371, %v363
    %v380 = vpack.c.b16 %v372, %v364
    %v381 = vpack.c.b16 %v373, %v365
    %v382 = vpack.c.b16 %v374, %v366
    %v383 = vpack.c.b16 %v375, %v367
    %vm392 = vcmask 130048
    %v394 = vsel %vm392, %v343, 0
    %396 = vmatprep.subr.bf16.mxu0 %v377
    %397 = vmatpush1.bf16.msra.mxu0 %v376
    %398 = vmatprep.subr.bf16.mxu0 0
    %399 = vmatpush1.bf16.msra.mxu0 0
    %400 = vmatprep.subr.bf16.mxu0 0
    %401 = vmatpush1.bf16.msra.mxu0 0
    %402 = vmatprep.subr.bf16.mxu0 0
    %403 = vmatpush1.bf16.msra.mxu0 0
    %404 = vmatprep.subr.bf16.mxu0 0
    %405 = vmatpush1.bf16.msra.mxu0 0
    %406 = vmatprep.subr.bf16.mxu0 0
    %407 = vmatpush1.bf16.msra.mxu0 0
    %408 = vmatprep.subr.bf16.mxu0 0
    %409 = vmatpush1.bf16.msra.mxu0 0
    %410 = vmatprep.subr.bf16.mxu0 0
    %411 = vmatpush1.bf16.msra.mxu0 0
    %412 = vmatprep.subr.bf16.mxu0 0
    %413 = vmatpush1.bf16.msra.mxu0 0
    %414 = vmatprep.subr.bf16.mxu0 0
    %415 = vmatpush1.bf16.msra.mxu0 0
    %416 = vmatprep.subr.bf16.mxu0 0
    %417 = vmatpush1.bf16.msra.mxu0 0
    %418 = vmatprep.subr.bf16.mxu0 0
    %419 = vmatpush1.bf16.msra.mxu0 0
    %420 = vmatprep.subr.bf16.mxu0 0
    %421 = vmatpush1.bf16.msra.mxu0 0
    %422 = vmatprep.subr.bf16.mxu0 0
    %423 = vmatpush1.bf16.msra.mxu0 0
    %424 = vmatprep.subr.bf16.mxu0 0
    %425 = vmatpush1.bf16.msra.mxu0 0
    %426 = vmatprep.subr.bf16.mxu0 0
    %427 = vmatpush1.bf16.msra.mxu0 0
    %428 = vmatprep.mubr.bf16.mxu0 0
    %429 = vmatmul.mubr.bf16.gmra.mrb[0].mxu0 %v394
    %v430 = vpop.f32.mrb[0].mxu0
    %v431 = vadd.f32 0.0, %v430
    %v432 = vpop.f32.mrb[0].mxu0
    %v433 = vadd.f32 0.0, %v432
    %v434 = vpop.f32.mrb[0].mxu0
    %v435 = vpop.f32.mrb[0].mxu0
    %436 = vdwg.mxu0
    %437 = vmatprep.subr.bf16.mxu0 %v379
    %438 = vmatpush1.bf16.msra.mxu0 %v378
    %439 = vmatprep.subr.bf16.mxu0 0
    %440 = vmatpush1.bf16.msra.mxu0 0
    %441 = vmatprep.subr.bf16.mxu0 0
    %442 = vmatpush1.bf16.msra.mxu0 0
    %443 = vmatprep.subr.bf16.mxu0 0
    %444 = vmatpush1.bf16.msra.mxu0 0
    %445 = vmatprep.subr.bf16.mxu0 0
    %446 = vmatpush1.bf16.msra.mxu0 0
    %447 = vmatprep.subr.bf16.mxu0 0
    %448 = vmatpush1.bf16.msra.mxu0 0
    %449 = vmatprep.subr.bf16.mxu0 0
    %450 = vmatpush1.bf16.msra.mxu0 0
    %451 = vmatprep.subr.bf16.mxu0 0
    %452 = vmatpush1.bf16.msra.mxu0 0
    %453 = vmatprep.subr.bf16.mxu0 0
    %454 = vmatpush1.bf16.msra.mxu0 0
    %455 = vmatprep.subr.bf16.mxu0 0
    %456 = vmatpush1.bf16.msra.mxu0 0
    %457 = vmatprep.subr.bf16.mxu0 0
    %458 = vmatpush1.bf16.msra.mxu0 0
    %459 = vmatprep.subr.bf16.mxu0 0
    %460 = vmatpush1.bf16.msra.mxu0 0
    %461 = vmatprep.subr.bf16.mxu0 0
    %462 = vmatpush1.bf16.msra.mxu0 0
    %463 = vmatprep.subr.bf16.mxu0 0
    %464 = vmatpush1.bf16.msra.mxu0 0
    %465 = vmatprep.subr.bf16.mxu0 0
    %466 = vmatpush1.bf16.msra.mxu0 0
    %467 = vmatprep.subr.bf16.mxu0 0
    %468 = vmatpush1.bf16.msra.mxu0 0
    %469 = vmatprep.mubr.bf16.mxu0 0
    %470 = vmatmul.mubr.bf16.gmra.mrb[0].mxu0 %v394
    %v471 = vpop.f32.mrb[0].mxu0
    %v472 = vadd.f32 0.0, %v471
    %v473 = vpop.f32.mrb[0].mxu0
    %v474 = vadd.f32 0.0, %v473
    %v475 = vpop.f32.mrb[0].mxu0
    %v476 = vpop.f32.mrb[0].mxu0
    %477 = vdwg.mxu0
    %478 = vmatprep.subr.bf16.mxu0 %v381
    %479 = vmatpush1.bf16.msra.mxu0 %v380
    %480 = vmatprep.subr.bf16.mxu0 0
    %481 = vmatpush1.bf16.msra.mxu0 0
    %482 = vmatprep.subr.bf16.mxu0 0
    %483 = vmatpush1.bf16.msra.mxu0 0
    %484 = vmatprep.subr.bf16.mxu0 0
    %485 = vmatpush1.bf16.msra.mxu0 0
    %486 = vmatprep.subr.bf16.mxu0 0
    %487 = vmatpush1.bf16.msra.mxu0 0
    %488 = vmatprep.subr.bf16.mxu0 0
    %489 = vmatpush1.bf16.msra.mxu0 0
    %490 = vmatprep.subr.bf16.mxu0 0
    %491 = vmatpush1.bf16.msra.mxu0 0
    %492 = vmatprep.subr.bf16.mxu0 0
    %493 = vmatpush1.bf16.msra.mxu0 0
    %494 = vmatprep.subr.bf16.mxu0 0
    %495 = vmatpush1.bf16.msra.mxu0 0
    %496 = vmatprep.subr.bf16.mxu0 0
    %497 = vmatpush1.bf16.msra.mxu0 0
    %498 = vmatprep.subr.bf16.mxu0 0
    %499 = vmatpush1.bf16.msra.mxu0 0
    %500 = vmatprep.subr.bf16.mxu0 0
    %501 = vmatpush1.bf16.msra.mxu0 0
    %502 = vmatprep.subr.bf16.mxu0 0
    %503 = vmatpush1.bf16.msra.mxu0 0
    %504 = vmatprep.subr.bf16.mxu0 0
    %505 = vmatpush1.bf16.msra.mxu0 0
    %506 = vmatprep.subr.bf16.mxu0 0
    %507 = vmatpush1.bf16.msra.mxu0 0
    %508 = vmatprep.subr.bf16.mxu0 0
    %509 = vmatpush1.bf16.msra.mxu0 0
    %510 = vmatprep.mubr.bf16.mxu0 0
    %511 = vmatmul.mubr.bf16.gmra.mrb[0].mxu0 %v394
    %v512 = vpop.f32.mrb[0].mxu0
    %v513 = vadd.f32 0.0, %v512
    %v514 = vpop.f32.mrb[0].mxu0
    %v515 = vadd.f32 0.0, %v514
    %v516 = vpop.f32.mrb[0].mxu0
    %v517 = vpop.f32.mrb[0].mxu0
    %518 = vdwg.mxu0
    %519 = vmatprep.subr.bf16.mxu0 %v383
    %520 = vmatpush1.bf16.msra.mxu0 %v382
    %521 = vmatprep.subr.bf16.mxu0 0
    %522 = vmatpush1.bf16.msra.mxu0 0
    %523 = vmatprep.subr.bf16.mxu0 0
    %524 = vmatpush1.bf16.msra.mxu0 0
    %525 = vmatprep.subr.bf16.mxu0 0
    %526 = vmatpush1.bf16.msra.mxu0 0
    %527 = vmatprep.subr.bf16.mxu0 0
    %528 = vmatpush1.bf16.msra.mxu0 0
    %529 = vmatprep.subr.bf16.mxu0 0
    %530 = vmatpush1.bf16.msra.mxu0 0
    %531 = vmatprep.subr.bf16.mxu0 0
    %532 = vmatpush1.bf16.msra.mxu0 0
    %533 = vmatprep.subr.bf16.mxu0 0
    %534 = vmatpush1.bf16.msra.mxu0 0
    %535 = vmatprep.subr.bf16.mxu0 0
    %536 = vmatpush1.bf16.msra.mxu0 0
    %537 = vmatprep.subr.bf16.mxu0 0
    %538 = vmatpush1.bf16.msra.mxu0 0
    %539 = vmatprep.subr.bf16.mxu0 0
    %540 = vmatpush1.bf16.msra.mxu0 0
    %541 = vmatprep.subr.bf16.mxu0 0
    %542 = vmatpush1.bf16.msra.mxu0 0
    %543 = vmatprep.subr.bf16.mxu0 0
    %544 = vmatpush1.bf16.msra.mxu0 0
    %545 = vmatprep.subr.bf16.mxu0 0
    %546 = vmatpush1.bf16.msra.mxu0 0
    %547 = vmatprep.subr.bf16.mxu0 0
    %548 = vmatpush1.bf16.msra.mxu0 0
    %549 = vmatprep.subr.bf16.mxu0 0
    %550 = vmatpush1.bf16.msra.mxu0 0
    %551 = vmatprep.mubr.bf16.mxu0 0
    %552 = vmatmul.mubr.bf16.gmra.mrb[0].mxu0 %v394
    %v553 = vpop.f32.mrb[0].mxu0
    %v554 = vadd.f32 0.0, %v553
    %v555 = vpop.f32.mrb[0].mxu0
    %v556 = vadd.f32 0.0, %v555
    %v557 = vpop.f32.mrb[0].mxu0
    %v558 = vpop.f32.mrb[0].mxu0
    %559 = vdwg.mxu0
    %v560 = vmul.f32 %v335, %v431
    %v561 = vmul.f32 %v336, %v433
    %v562 = vmul.f32 %v337, %v472
    %v563 = vmul.f32 %v338, %v474
    %v564 = vmul.f32 %v339, %v513
    %v565 = vmul.f32 %v340, %v515
    %v566 = vmul.f32 %v341, %v554
    %v567 = vmul.f32 %v342, %v556
    %568 = vst [vmem:[#allocation10] sm:$0xff] %v560
    %569 = vst [vmem:[#allocation10 + $0x8] sm:$0xff] %v561
    %570 = vst [vmem:[#allocation10 + $0x10] sm:$0xff] %v562
    %571 = vst [vmem:[#allocation10 + $0x18] sm:$0xff] %v563
    %572 = vst [vmem:[#allocation10 + $0x20] sm:$0xff] %v564
    %573 = vst [vmem:[#allocation10 + $0x28] sm:$0xff] %v565
    %574 = vst [vmem:[#allocation10 + $0x30] sm:$0xff] %v566
    %575 = vst [vmem:[#allocation10 + $0x38] sm:$0xff] %v567
    // Predicated region
    $region34: #{tpu_custom_call.1} parent=1 // pred_check
      _
    $region35: #{tpu_custom_call.1} parent=1 // pred_check_branch
      %577 = sbr.rel (0) target = $region37
    $region36: #{tpu_custom_call.1} parent=1 // pred_region
      %s579 = ssub.s32 1024, 1024
      %580 = vsyncadd [#allocation4], %s579
      %s582 = sshll.u32 [#allocation10], 4
      %s583 = int_to_ptr.vmem [resolvable:$true] %s582
      %585 = dma.vmem_to_hbm [thread:$0]  %s583, 1024, %s4, [#allocation4]
    $region37: #{tpu_custom_call.1} parent=1 // pred_fallthru
      _
    // Predicated region
    $region38: #{tpu_custom_call.1} parent=1 // pred_check
      _
    $region39: #{tpu_custom_call.1} parent=1 // pred_check_branch
      %587 = sbr.rel (0) target = $region41
    $region40: #{tpu_custom_call.1} parent=1 // pred_region
      %588 = dma.done [#allocation4], 1024
    $region41: #{tpu_custom_call.1} parent=1 // pred_fallthru
      _
    %589 = vsyncpa [#allocation3], 1
    %590 = vsyncpa [#allocation6], 1
    %591 = vsyncpa [#allocation9], 1
    %592 = vsyncpa [#allocation4], 1

</llo_original>
